<compile_context>
chip_gen: v7x
topology: tpu7x:2x2x1
jax: 0.10.0
libtpu: 0.0.40
codegen_flags: <defaults>
</compile_context>

<pallas_src>
import functools

import jax
import jax.numpy as jnp
from jax.experimental import pallas as pl
from jax.experimental.pallas import tpu as pltpu

LN_EPS = 1e-6


def _word_emb_kernel(ids_ref, table_ref, gb_ref, out_ref, rows_vmem, sems, *,
                     token_block, chunk, lookahead, apply_layer_norm, eps,
                     table_in_vmem):
    # ids_ref:   (n_pad,)         int32  SMEM (scalar-prefetched token ids)
    # table_ref: (V, E)                  HBM (pl.ANY) or VMEM (small-table path)
    # gb_ref:    (2, E)           f32    VMEM, row 0 = gamma, row 1 = beta
    # out_ref:   (token_block, E)        VMEM output block
    # rows_vmem: (token_block, E)        VMEM gather landing buffer (scratch)
    # sems:      (lookahead,)            DMA semaphores, one per in-flight chunk
    base = pl.program_id(0) * token_block
    num_chunks = token_block // chunk

    def issue_chunk(c):
        # Fully unrolled: SMEM id loads, address math and DMA descriptor
        # pushes can co-issue; one shared semaphore per chunk.
        for r in range(chunk):
            row = c * chunk + r
            tok = ids_ref[base + row]
            pltpu.make_async_copy(
                table_ref.at[tok], rows_vmem.at[row], sems.at[c % lookahead]
            ).start()

    def wait_chunk(c):
        # ONE aggregate wait per chunk: this descriptor's byte count
        # (chunk * E * itemsize) equals the sum of the chunk's row copies,
        # so a single wait retires the whole chunk (replaces per-row waits).
        sl = pl.ds(c * chunk, chunk)
        pltpu.make_async_copy(
            rows_vmem.at[sl], rows_vmem.at[sl], sems.at[c % lookahead]
        ).wait()

    gamma = gb_ref[0:1, :]
    beta = gb_ref[1:2, :]

    def compute_chunk(c):
        sl = pl.ds(c * chunk, chunk)
        x = rows_vmem[sl, :].astype(jnp.float32)
        if apply_layer_norm:
            # Two-pass variance (mean, then E[(x-mean)^2]) avoids the
            # catastrophic cancellation of the E[x^2] - mean^2 form.
            mean = jnp.mean(x, axis=-1, keepdims=True)
            xc = x - mean
            var = jnp.mean(xc * xc, axis=-1, keepdims=True)
            x = xc * jax.lax.rsqrt(var + eps) * gamma + beta
        out_ref[sl, :] = x.astype(out_ref.dtype)

    if table_in_vmem:
        # Small-table fast path: table is VMEM-resident; gather rows with
        # on-chip dynamic row loads (no per-token HBM round trips, no DMAs).
        @pl.loop(0, token_block)
        def _gather(r):
            tok = ids_ref[base + r]
            rows_vmem[r, :] = table_ref[tok, :]

        for c in range(num_chunks):
            compute_chunk(c)
    else:
        # HBM row gather with intra-block pipelining.
        # Prologue: put up to `lookahead` chunks of row copies in flight.
        for c in range(min(lookahead, num_chunks)):
            issue_chunk(c)
        # Steady state: retire chunk c with one wait, refill the pipeline with
        # chunk c+lookahead, then LN + store chunk c while later chunks stream.
        for c in range(num_chunks):
            wait_chunk(c)
            if c + lookahead < num_chunks:
                issue_chunk(c + lookahead)
            compute_chunk(c)


def word_embedding_forward(src, table, gamma, beta, *, token_block=512,
                           chunk_rows=64, lookahead=4, apply_layer_norm=True,
                           vmem_table=None, eps=LN_EPS):
    """src: [batch, seq] int ids; table: [V, E]; gamma/beta: [E] -> [batch, seq, E]."""
    batch, seq = src.shape
    vocab_size, emb_size = table.shape
    n = batch * seq

    out_dtype = table.dtype
    if jnp.dtype(table.dtype).itemsize < 4:
        # TODO(synk): native sub-32-bit (bf16) row gather needs the
        # pack-2xbf16->u32 strided-DMA trick; until then upcast for the gather.
        table = table.astype(jnp.float32)
    work_dtype = table.dtype
    itemsize = jnp.dtype(work_dtype).itemsize

    # Token block: multiple of 8 (sublane granularity); large blocks amortize
    # the per-grid-step overhead and keep more row DMAs in flight.
    tb = max(8, min(int(token_block), max(n, 8)))
    tb = ((tb + 7) // 8) * 8
    n_pad = ((n + tb - 1) // tb) * tb

    # Chunk: unit of gather/compute overlap inside a block; must divide tb.
    chunk = max(8, min(int(chunk_rows), tb))
    chunk = (chunk // 8) * 8
    while tb % chunk:
        chunk -= 8
    lookahead = max(1, int(lookahead))

    ids = src.reshape(n).astype(jnp.int32)
    if n_pad != n:
        ids = jnp.pad(ids, (0, n_pad - n))        # padded ids gather row 0 (sliced off)

    # gamma/beta packed into one (2, E) constant block (single input stream).
    gb = jnp.stack([gamma.astype(jnp.float32), beta.astype(jnp.float32)], axis=0)

    # Small-table fast path: keep the whole table resident in VMEM (constant
    # block, fetched once).  Threshold conservative for v7x's 64 MiB VMEM.
    table_bytes = vocab_size * emb_size * itemsize
    if vmem_table is None:
        vmem_table = table_bytes <= (2 << 20)
    if vmem_table:
        table_spec = pl.BlockSpec((vocab_size, emb_size), lambda i, ids: (0, 0))
    else:
        table_spec = pl.BlockSpec(memory_space=pl.ANY)   # stays in HBM; manual DMA gather

    kernel = functools.partial(
        _word_emb_kernel, token_block=tb, chunk=chunk, lookahead=lookahead,
        apply_layer_norm=apply_layer_norm, eps=eps, table_in_vmem=bool(vmem_table))

    # Memory-bound cost model (gather + writeback); LN flops are incidental.
    cost = pl.CostEstimate(
        flops=8 * n_pad * emb_size,
        transcendentals=n_pad,
        bytes_accessed=2 * n_pad * emb_size * itemsize + 4 * n_pad
        + (table_bytes if vmem_table else 0),
    )

    # Raise the scoped VMEM limit only when big tiles need it (v5e default is
    # 16 MiB; v6e/v7x 32 MiB).  rows scratch + double-buffered output block
    # + (possibly double-buffered) resident table + gamma/beta.
    vmem_need = (tb * emb_size * itemsize + 2 * tb * emb_size * itemsize
                 + (2 * table_bytes if vmem_table else 0) + 4 * emb_size * 4)
    compiler_kwargs = dict(dimension_semantics=("parallel",))
    if vmem_need > (12 << 20):
        compiler_kwargs["vmem_limit_bytes"] = int(min(vmem_need + (8 << 20), 64 << 20))

    out_flat = pl.pallas_call(
        kernel,
        out_shape=jax.ShapeDtypeStruct((n_pad, emb_size), work_dtype),
        grid_spec=pltpu.PrefetchScalarGridSpec(
            num_scalar_prefetch=1,                          # ids -> SMEM
            grid=(n_pad // tb,),
            in_specs=[
                table_spec,                                 # HBM (ANY) or VMEM-resident
                pl.BlockSpec((2, emb_size), lambda i, ids: (0, 0)),   # gamma/beta
            ],
            out_specs=pl.BlockSpec((tb, emb_size), lambda i, ids: (i, 0)),
            scratch_shapes=[
                pltpu.VMEM((tb, emb_size), work_dtype),     # gather landing buffer
                pltpu.SemaphoreType.DMA((lookahead,)),      # one sem per in-flight chunk
            ],
        ),
        compiler_params=pltpu.CompilerParams(**compiler_kwargs),
        cost_estimate=cost,
    )(ids, table, gb)

    out = out_flat[:n].reshape(batch, seq, emb_size)
    return out.astype(out_dtype)


def _reference(src, table, gamma, beta, apply_layer_norm=True):
    emb = jnp.take(table, src, axis=0)
    if not apply_layer_norm:
        return emb
    mean = jnp.mean(emb, axis=-1, keepdims=True)
    var = jnp.mean((emb - mean) ** 2, axis=-1, keepdims=True)
    return (emb - mean) / jnp.sqrt(var + LN_EPS) * gamma + beta


if __name__ == "__main__":
    # Small shapes implied by the forward: src [batch, seq] of token ids.
    batch, seq = 2, 8
    vocab_size, emb_size = 64, 128

    key = jax.random.PRNGKey(0)
    k_ids, k_emb = jax.random.split(key)

    src = jax.random.randint(k_ids, (batch, seq), 0, vocab_size, dtype=jnp.int32)
    # nn.Embedding default init: N(0, 1). LayerNorm: gamma=1, beta=0.
    table = jax.random.normal(k_emb, (vocab_size, emb_size), dtype=jnp.float32)
    gamma = jnp.ones((emb_size,), dtype=jnp.float32)
    beta = jnp.zeros((emb_size,), dtype=jnp.float32)

    ref = _reference(src, table, gamma, beta)

    # 1) Defaults: small table -> VMEM-resident fast path, single block.
    out = jax.block_until_ready(word_embedding_forward(src, table, gamma, beta))
    assert out.shape == (batch, seq, emb_size)
    assert jnp.allclose(out, ref, atol=1e-4, rtol=1e-4), "mismatch (fast path)"

    # 2) HBM row-gather path with intra-block chunk pipelining (2 chunks/block,
    #    one aggregate wait per chunk).
    out2 = jax.block_until_ready(word_embedding_forward(
        src, table, gamma, beta, token_block=16, chunk_rows=8, lookahead=2,
        vmem_table=False))
    assert jnp.allclose(out2, ref, atol=1e-4, rtol=1e-4), "mismatch (HBM, chunked)"

    # 3) HBM row-gather path, multi-block grid.
    out3 = jax.block_until_ready(word_embedding_forward(
        src, table, gamma, beta, token_block=8, vmem_table=False))
    assert jnp.allclose(out3, ref, atol=1e-4, rtol=1e-4), "mismatch (HBM, grid=2)"

    # 4) remove_embedding_layernorm=True path (gather only).
    ref_noln = _reference(src, table, gamma, beta, apply_layer_norm=False)
    out4 = jax.block_until_ready(word_embedding_forward(
        src, table, gamma, beta, apply_layer_norm=False))
    assert jnp.allclose(out4, ref_noln, atol=1e-5, rtol=1e-5), "mismatch (no LN)"

    # 5) bf16 embedding table (currently gathered via the f32-upcast fallback;
    #    LN math in f32, output back in bf16).
    table_bf16 = table.astype(jnp.bfloat16)
    ref_bf16 = _reference(src, table_bf16.astype(jnp.float32), gamma, beta)
    out5 = jax.block_until_ready(word_embedding_forward(src, table_bf16, gamma, beta))
    assert out5.dtype == jnp.bfloat16
    assert jnp.allclose(out5.astype(jnp.float32), ref_bf16, atol=2e-2, rtol=2e-2), \
        "mismatch (bf16)"

    # TODO(synk): training-mode dropout (pltpu.prng_seed + prng_random_bits)
    # not implemented; forward matches eval-mode semantics.
    print("KERNEL_OK")
</pallas_src>

<mosaic_0001>
module attributes {stable_mosaic.version = 11 : i64} {
  func.func @_word_emb_kernel(%arg0: i32, %arg1: memref<16xi32, #tpu.memory_space<smem>>, %arg2: memref<64x128xf32, #tpu.memory_space<vmem>>, %arg3: memref<2x128xf32, #tpu.memory_space<vmem>>, %arg4: memref<16x128xf32, #tpu.memory_space<vmem>>, %arg5: memref<16x128xf32, #tpu.memory_space<vmem>>, %arg6: memref<4x!tpu.dma_semaphore, #tpu.memory_space<semaphore_mem>>) attributes {dimension_semantics = [#tpu.dimension_semantics<parallel>], iteration_bounds = array<i64: 1>, scalar_prefetch = 1 : i64, scratch_operands = 2 : i64, tpu.core_type = #tpu.core_type<tc>, window_params = [{pipeline_mode = #tpu.pipeline_mode<synchronous>, transform_indices = @transform_0, window_bounds = array<i64: 64, 128>}, {pipeline_mode = #tpu.pipeline_mode<synchronous>, transform_indices = @transform_1, window_bounds = array<i64: 2, 128>}, {transform_indices = @transform_2, window_bounds = array<i64: 16, 128>}]} {
    %c16_i32 = arith.constant 16 : i32
    %0 = arith.muli %arg0, %c16_i32 : i32
    %c0 = arith.constant 0 : index
    %c0_0 = arith.constant 0 : index
    %1 = vector.load %arg3[%c0, %c0_0] : memref<2x128xf32, #tpu.memory_space<vmem>>, vector<1x128xf32>
    %c1 = arith.constant 1 : index
    %c0_1 = arith.constant 0 : index
    %2 = vector.load %arg3[%c1, %c0_1] : memref<2x128xf32, #tpu.memory_space<vmem>>, vector<1x128xf32>
    %c0_i32 = arith.constant 0 : i32
    %c16_i32_2 = arith.constant 16 : i32
    %3 = arith.addi %c0_i32, %c16_i32_2 : i32
    %c1_i32 = arith.constant 1 : i32
    scf.for %arg7 = %c0_i32 to %3 step %c1_i32  : i32 {
      %c1_i32_12 = arith.constant 1 : i32
      %26 = arith.muli %arg7, %c1_i32_12 : i32
      %c0_i32_13 = arith.constant 0 : i32
      %27 = arith.addi %c0_i32_13, %26 : i32
      %28 = arith.addi %0, %27 : i32
      %29 = arith.index_cast %28 : i32 to index
      %30 = memref.load %arg1[%29] : memref<16xi32, #tpu.memory_space<smem>>
      %31 = arith.index_cast %30 : i32 to index
      %c0_14 = arith.constant 0 : index
      %32 = vector.load %arg2[%31, %c0_14] : memref<64x128xf32, #tpu.memory_space<vmem>>, vector<1x128xf32>
      %33 = vector.shape_cast %32 : vector<1x128xf32> to vector<128xf32>
      %34 = arith.index_cast %27 : i32 to index
      %c0_15 = arith.constant 0 : index
      %35 = vector.load %arg5[%34, %c0_15] : memref<16x128xf32, #tpu.memory_space<vmem>>, vector<1x128xf32>
      %36 = vector.shape_cast %35 : vector<1x128xf32> to vector<128xf32>
      %37 = vector.shape_cast %33 : vector<128xf32> to vector<1x128xf32>
      tpu.vector_store %arg5[%34, %c0_15], %37 {strides = array<i32>} : memref<16x128xf32, #tpu.memory_space<vmem>>, vector<1x128xf32>,
    }
    %c16_i32_3 = arith.constant 16 : i32
    %c0_4 = arith.constant 0 : index
    %c0_5 = arith.constant 0 : index
    %4 = vector.load %arg5[%c0_4, %c0_5] : memref<16x128xf32, #tpu.memory_space<vmem>>, vector<16x128xf32>
    %cst = arith.constant dense<0.000000e+00> : vector<16xf32>
    %5 = vector.multi_reduction <add>, %4, %cst [1] : vector<16x128xf32> to vector<16xf32>
    %6 = vector.shape_cast %5 : vector<16xf32> to vector<16x1xf32>
    %cst_6 = arith.constant 1.280000e+02 : f32
    %7 = vector.broadcast %cst_6 : f32 to vector<16x1xf32>
    %8 = arith.divf %6, %7 : vector<16x1xf32>
    %9 = vector.broadcast %8 : vector<16x1xf32> to vector<16x128xf32>
    %10 = arith.subf %4, %9 : vector<16x128xf32>
    %11 = arith.mulf %10, %10 : vector<16x128xf32>
    %cst_7 = arith.constant dense<0.000000e+00> : vector<16xf32>
    %12 = vector.multi_reduction <add>, %11, %cst_7 [1] : vector<16x128xf32> to vector<16xf32>
    %13 = vector.shape_cast %12 : vector<16xf32> to vector<16x1xf32>
    %cst_8 = arith.constant 1.280000e+02 : f32
    %14 = vector.broadcast %cst_8 : f32 to vector<16x1xf32>
    %15 = arith.divf %13, %14 : vector<16x1xf32>
    %cst_9 = arith.constant 9.99999997E-7 : f32
    %16 = vector.broadcast %cst_9 : f32 to vector<16x1xf32>
    %17 = arith.addf %15, %16 : vector<16x1xf32>
    %18 = math.rsqrt %17 : vector<16x1xf32>
    %19 = vector.broadcast %18 : vector<16x1xf32> to vector<16x128xf32>
    %20 = arith.mulf %10, %19 : vector<16x128xf32>
    %21 = vector.broadcast %1 : vector<1x128xf32> to vector<16x128xf32>
    %22 = arith.mulf %20, %21 : vector<16x128xf32>
    %23 = vector.broadcast %2 : vector<1x128xf32> to vector<16x128xf32>
    %24 = arith.addf %22, %23 : vector<16x128xf32>
    %c0_10 = arith.constant 0 : index
    %c0_11 = arith.constant 0 : index
    %25 = vector.load %arg4[%c0_10, %c0_11] : memref<16x128xf32, #tpu.memory_space<vmem>>, vector<16x128xf32>
    tpu.vector_store %arg4[%c0_10, %c0_11], %24 {strides = array<i32>} : memref<16x128xf32, #tpu.memory_space<vmem>>, vector<16x128xf32>,
    return
  }
  func.func @transform_0(%arg0: i32, %arg1: memref<16xi32, #tpu.memory_space<smem>>) -> (i32, i32) {
    %c0_i32 = arith.constant 0 : i32
    %c0_i32_0 = arith.constant 0 : i32
    %c0_i32_1 = arith.constant 0 : i32
    return %c0_i32, %c0_i32_0 : i32, i32
  }
  func.func @transform_1(%arg0: i32, %arg1: memref<16xi32, #tpu.memory_space<smem>>) -> (i32, i32) {
    %c0_i32 = arith.constant 0 : i32
    %c0_i32_0 = arith.constant 0 : i32
    %c0_i32_1 = arith.constant 0 : i32
    return %c0_i32, %c0_i32_0 : i32, i32
  }
  func.func @transform_2(%arg0: i32, %arg1: memref<16xi32, #tpu.memory_space<smem>>) -> (i32, i32) {
    %c0_i32 = arith.constant 0 : i32
    %c0_i32_0 = arith.constant 0 : i32
    return %arg0, %c0_i32 : i32, i32
  }
}

</mosaic_0001>

<llo_original>
// kernel: tpu_custom_call.1
$region0: #{tpu_custom_call.1}
  #allocation0 [shape = 'u32[]', space=smem, size = 0x4, offset = 0x4, fixed_abs, tag = 'smem constant byte address 0x4 - core index']
  #allocation1 [shape = 'u32[144,128]{1,0:T(1,128)}', space=vmem, size = 0x12000, scoped, tag = 'internal scratch']
  #allocation2 [shape = 'f32[16,128]{1,0:T(8,128)}', space=vmem, size = 0x2000, scoped, tag = 'scratch operand']
  #allocation3 [shape = 's32[4]{0}', space=sflag, size = 0x10, scoped, tag = 'scratch operand']
  #allocation4 [shape = 's32[1]{0}', space=sflag, size = 0x4, scoped, tag = 'scoped memory for tpu_custom_call.1']
  #allocation5 [shape = 'u8[512]{0}', space=smem, size = 0x200, scoped, tag = 'prefetched SMEM operand 0']
  %s0 = inlined_call_operand.hbm [shape: s32[16], index: 0, kind: input, shape index: {}]
  %s1 = inlined_call_operand.hbm [shape: f32[64,128], index: 1, kind: input, shape index: {}]
  %s2 = inlined_call_operand.vmem [shape: f32[2,128], index: 2, kind: input, shape index: {}]
  %s3 = inlined_call_operand.hbm [shape: f32[16,128], index: 3, kind: output, shape index: {}]
  %s4 = sld [smem:[#allocation0]]
  $region29: #{tpu_custom_call.1} parent=0
    _
  %s6 = ssub.s32 1, %s4
  %s7 = scalar_select 0, %s6, %s4
  %9 = dma.hbm_to_smem %s0, 16, [#allocation5], [#allocation4]
  %10 = dma.done [#allocation4], 16
  %11 = sfence
  $region1: #{tpu_custom_call.1} parent=0
    #allocation6 [shape = 'u8[32768]{0}', space=vmem, size = 0x8000, scoped, tag = 'input window, operand 1, single buffered']
    #allocation7 [shape = 's32[1]{0}', space=sflag, size = 0x4, scoped, tag = 'scoped memory for tpu_custom_call.1']
    #allocation8 [shape = 's32[1]{0}', space=sflag, size = 0x4, scoped, tag = 'scoped memory for tpu_custom_call.1']
    #allocation9 [shape = 'u8[8192]{0}', space=vmem, size = 0x2000, scoped, tag = 'output window, operand 0, single buffered']
    %12 = vsyncpa [#allocation7], 0
    %13 = vsyncpa [#allocation8], 0
    // Predicated region
    $region2: #{tpu_custom_call.1} parent=1 // pred_check
      _
    $region3: #{tpu_custom_call.1} parent=1 // pred_check_branch
      %15 = sbr.rel (0) target = $region5
    $region4: #{tpu_custom_call.1} parent=1 // pred_region
      %s17 = ssub.s32 1024, 1024
      %18 = vsyncadd [#allocation7], %s17
      %s19 = sshll.u32 [#allocation6], 4
      %s20 = int_to_ptr.vmem [resolvable:$true] %s19
      %25 = dma.hbm_to_vmem [thread:$0]  %s1, 1024, %s20, [#allocation7], 128, 128, 8
    $region5: #{tpu_custom_call.1} parent=1 // pred_fallthru
      _
    // Predicated region
    $region6: #{tpu_custom_call.1} parent=1 // pred_check
      _
    $region7: #{tpu_custom_call.1} parent=1 // pred_check_branch
      %27 = sbr.rel (0) target = $region9
    $region8: #{tpu_custom_call.1} parent=1 // pred_region
      _
    $region9: #{tpu_custom_call.1} parent=1 // pred_fallthru
      _
    // Predicated region
    $region10: #{tpu_custom_call.1} parent=1 // pred_check
      _
    $region11: #{tpu_custom_call.1} parent=1 // pred_check_branch
      %29 = sbr.rel (0) target = $region13
    $region12: #{tpu_custom_call.1} parent=1 // pred_region
      %30 = dma.done [#allocation7], 1024
    $region13: #{tpu_custom_call.1} parent=1 // pred_fallthru
      _
    %s31 = smul.u32 0, 16
    %v32 = vld [vmem:[%s2] sm:$0x1]
    %v33 = vld [vmem:[%s2 + $0x1] sm:$0x1]
    loop: start=0, step=1, limit=16
    $region14: #{tpu_custom_call.1} parent=1 // loop_pre_header
      _
    $region15: #{tpu_custom_call.1} parent=1 // loop_header
      %s35 = sphi 0, %s39
      %p36 = scmp.ge.s32.totalorder %s35, 16
    $region16: #{tpu_custom_call.1} parent=1 // loop_header_branch
      %38 = sbr.rel (%p36) target = $region20
    $region17: #{tpu_custom_call.1} parent=1 // loop_body
      %s40 = sadd.s32 %s31, %s35
      %s41 = sld [smem:[#allocation5 + %s40]]
      %s42 = scalar_lea.vmem [#allocation6], %s41
      %v43 = vld [vmem:[%s42] sm:$0x1]
      %s44 = scalar_lea.vmem [#allocation2], %s35
      %45 = vst [vmem:[%s44] sm:$0x1] %v43
    $region18: #{tpu_custom_call.1} parent=1 // loop_footer
      %s39 = sadd.s32 1, %s35
    $region19: #{tpu_custom_call.1} parent=1 // loop_footer_branch
      %34 = sbr.rel target = $region15
    $region20: #{tpu_custom_call.1} parent=1 // loop_exit
      _
    %v46 = vld [vmem:[#allocation2] sm:$0xff]
    %v47 = vld [vmem:[#allocation2 + $0x8] sm:$0xff]
    %48 = vadd.xlane.f32.xlu0 %v46
    %v49 = vpop.xlane.xlu0 %48
    %50 = vadd.xlane.f32.xlu0 %v47
    %v51 = vpop.xlane.xlu0 %50
    %v52 = vrcp.pop 128.0
    %v53 = vmul.f32 %v49, %v52
    %v54 = vmul.f32 %v51, %v52
    %v55 = vsub.f32 %v46, %v53
    %v56 = vsub.f32 %v47, %v54
    %v57 = vmul.f32 %v55, %v55
    %v58 = vmul.f32 %v56, %v56
    %59 = vadd.xlane.f32.xlu0 %v57
    %v60 = vpop.xlane.xlu0 %59
    %61 = vadd.xlane.f32.xlu0 %v58
    %v62 = vpop.xlane.xlu0 %61
    %v63 = vmul.f32 %v60, %v52
    %v64 = vmul.f32 %v62, %v52
    %v65 = vadd.f32 %v63, 1e-06
    %v66 = vadd.f32 %v64, 1e-06
    %v67 = vrsqrt.pop %v65
    %v68 = vrsqrt.pop %v66
    %v69 = vmul.f32 %v55, %v67
    %v70 = vmul.f32 %v56, %v68
    %v71 = vlaneseq
    %v72 = vshrl.u32 %v71, 7
    %v73 = vsub.s32 0, %v72
    %v74 = vrot.slane %v32, %v73
    %v75 = vmul.f32 %v69, %v74
    %v76 = vmul.f32 %v70, %v74
    %v77 = vlaneseq
    %v78 = vshrl.u32 %v77, 7
    %v79 = vsub.s32 0, %v78
    %v80 = vrot.slane %v33, %v79
    %v81 = vadd.f32 %v75, %v80
    %v82 = vadd.f32 %v76, %v80
    %83 = vst [vmem:[#allocation9] sm:$0xff] %v81
    %84 = vst [vmem:[#allocation9 + $0x8] sm:$0xff] %v82
    // Predicated region
    $region21: #{tpu_custom_call.1} parent=1 // pred_check
      _
    $region22: #{tpu_custom_call.1} parent=1 // pred_check_branch
      %86 = sbr.rel (0) target = $region24
    $region23: #{tpu_custom_call.1} parent=1 // pred_region
      %s88 = ssub.s32 256, 256
      %89 = vsyncadd [#allocation8], %s88
      %s90 = sshll.u32 [#allocation9], 4
      %s91 = int_to_ptr.vmem [resolvable:$true] %s90
      %96 = dma.vmem_to_hbm [thread:$0]  %s91, 256, %s3, [#allocation8], 128, 128, 8
    $region24: #{tpu_custom_call.1} parent=1 // pred_fallthru
      _
    // Predicated region
    $region25: #{tpu_custom_call.1} parent=1 // pred_check
      _
    $region26: #{tpu_custom_call.1} parent=1 // pred_check_branch
      %98 = sbr.rel (0) target = $region28
    $region27: #{tpu_custom_call.1} parent=1 // pred_region
      %99 = dma.done [#allocation8], 256
    $region28: #{tpu_custom_call.1} parent=1 // pred_fallthru
      _
    %100 = vsyncpa [#allocation7], 1
    %101 = vsyncpa [#allocation8], 1
  %102 = vsyncmov [#allocation3]
  %s103 = vpop.sfrf %102
  %p104 = scmp.eq.s32.totalorder %s103, 0
  %p105 = pneg %p104
  %107 = shalt.err (%p105)
  %s108 = scalar_lea.sflag [#allocation3], 1
  %109 = vsyncmov %s108
  %s110 = vpop.sfrf %109
  %p111 = scmp.eq.s32.totalorder %s110, 0
  %p112 = pneg %p111
  %114 = shalt.err (%p112)
  %s115 = scalar_lea.sflag [#allocation3], 2
  %116 = vsyncmov %s115
  %s117 = vpop.sfrf %116
  %p118 = scmp.eq.s32.totalorder %s117, 0
  %p119 = pneg %p118
  %121 = shalt.err (%p119)
  %s122 = scalar_lea.sflag [#allocation3], 3
  %123 = vsyncmov %s122
  %s124 = vpop.sfrf %123
  %p125 = scmp.eq.s32.totalorder %s124, 0
  %p126 = pneg %p125
  %128 = shalt.err (%p126)

</llo_original>
